<compile_context>
chip_gen: v5e
topology: v5e:2x2
jax: 0.10.0
libtpu: 0.0.40
codegen_flags: <defaults>
</compile_context>

<pallas_src>
import functools
import math

import jax
import jax.numpy as jnp
from jax.experimental import pallas as pl
from jax.experimental.pallas import tpu as pltpu

_SUB = 8                      # f32 sublanes per vreg: rows gathered per inner iteration
_VMEM_HEADROOM = 8 << 20      # bytes kept free below physical VMEM capacity
_SMEM_IDS_LIMIT = 1 << 20     # conservative cap for scalar-prefetched token ids


def _round_up(n, m):
    return ((n + m - 1) // m) * m


def _next_pow2(n):
    return 1 << max(0, int(n - 1).bit_length())


def _vmem_capacity_bytes():
    """Per-TensorCore physical VMEM (generation aware), with a safe fallback."""
    try:
        cap = int(pltpu.get_tpu_info().vmem_capacity_bytes)
        if cap > 0:
            return cap
    except Exception:
        pass
    return 64 << 20  # conservative: v7x has 64 MiB / TC (v5e / v6e have 128 MiB)


# --------------------------------------------------------------------------
# Path 1: table resident in VMEM.
# --------------------------------------------------------------------------
def _embed_vmem_kernel(ids_ref, lut_ref, out_ref, *, tb, scale, dense_store):
    """ids_ref: SMEM (n_pad,) int32 token ids (scalar prefetch).
    lut_ref:  VMEM (vocab, d_model) table, resident (constant block).
    out_ref:  VMEM (tb, d_model) output tile for this grid step."""
    base = pl.program_id(0) * tb

    @pl.loop(0, tb // _SUB)
    def _(blk):
        r0 = pl.multiple_of(blk * _SUB, _SUB)
        # 8 independent scalar-id loads + row gathers kept in flight (unrolled),
        # instead of a serial sld -> vld -> vmul -> vst chain per row.
        rows = [lut_ref[pl.ds(ids_ref[base + r0 + j], 1), :] for j in range(_SUB)]
        if dense_store:
            # Merge into one sublane-dense (8, d_model) slab: one full-slab
            # scale multiply + one unmasked store per 8 rows.
            slab = jnp.concatenate(rows, axis=0) * scale
            out_ref[pl.ds(r0, _SUB), :] = slab.astype(out_ref.dtype)
        else:
            for j in range(_SUB):
                out_ref[pl.ds(r0 + j, 1), :] = (rows[j] * scale).astype(out_ref.dtype)


def _run_vmem_path(ids, lut, *, n_pad, tb, scale, capacity, fast):
    vocab, d_model = lut.shape
    itemsize = jnp.dtype(lut.dtype).itemsize
    table_bytes = vocab * d_model * itemsize
    table_bufs = 1 if fast else 2
    needed = table_bufs * table_bytes + 2 * tb * d_model * itemsize + (4 << 20)
    vmem_limit = int(min(max(needed, 16 << 20), capacity - (2 << 20)))

    if fast:
        # Constant-index resident block: a single buffer is enough (halves the
        # table's VMEM footprint vs the default double-buffering).
        lut_spec = pl.BlockSpec((vocab, d_model), lambda i, ids: (0, 0),
                                pipeline_mode=pl.Buffered(1))
    else:
        lut_spec = pl.BlockSpec((vocab, d_model), lambda i, ids: (0, 0))

    kernel = functools.partial(_embed_vmem_kernel, tb=tb, scale=scale,
                               dense_store=fast)
    return pl.pallas_call(
        kernel,
        out_shape=jax.ShapeDtypeStruct((n_pad, d_model), lut.dtype),
        grid_spec=pltpu.PrefetchScalarGridSpec(
            num_scalar_prefetch=1,                      # ids -> SMEM
            grid=(n_pad // tb,),
            in_specs=[lut_spec],
            out_specs=pl.BlockSpec((tb, d_model), lambda i, ids: (i, 0)),
        ),
        compiler_params=pltpu.CompilerParams(
            dimension_semantics=("parallel",),          # token blocks shard across TCs
            vmem_limit_bytes=vmem_limit,
        ),
    )(ids, lut)


# --------------------------------------------------------------------------
# Path 2: table stays in HBM, row-gather with a ring of in-flight DMAs.
# --------------------------------------------------------------------------
def _embed_hbm_kernel(ids_ref, lut_ref, out_ref, sem, *, tb, n_inflight):
    """ids_ref: SMEM (n_pad,) int32; lut_ref: HBM (vocab, d_model) pre-scaled
    by sqrt(d_model) (DMA cannot scale); out_ref: VMEM (tb, d_model);
    sem: DMA semaphores (n_inflight,)."""
    base = pl.program_id(0) * tb

    def issue(r):
        tok = ids_ref[base + r]
        pltpu.make_async_copy(
            lut_ref.at[pl.ds(tok, 1), :],
            out_ref.at[pl.ds(r, 1), :],
            sem.at[r % n_inflight],
        ).start()

    def wait(r):
        pltpu.make_async_copy(
            lut_ref.at[pl.ds(0, 1), :],                 # same shape => same wait amount
            out_ref.at[pl.ds(r, 1), :],
            sem.at[r % n_inflight],
        ).wait()

    @pl.loop(0, n_inflight)                             # prime the ring
    def _(r):
        issue(r)

    @pl.loop(n_inflight, tb)                            # steady state
    def _(r):
        wait(r - n_inflight)
        issue(r)

    @pl.loop(tb - n_inflight, tb)                       # drain
    def _(r):
        wait(r)


def _run_hbm_path(ids, lut, *, n_pad, tb, scale, capacity):
    vocab, d_model = lut.shape
    itemsize = jnp.dtype(lut.dtype).itemsize
    # Fold sqrt(d_model) into the table once; elementwise identical to scaling
    # after the gather, and mandatory here since the gather is pure DMA.
    lut_scaled = (lut.astype(jnp.float32) * scale).astype(lut.dtype)
    n_inflight = min(8, tb)
    needed = 2 * tb * d_model * itemsize + (4 << 20)
    vmem_limit = int(min(max(needed, 16 << 20), capacity - (2 << 20)))

    kernel = functools.partial(_embed_hbm_kernel, tb=tb, n_inflight=n_inflight)
    return pl.pallas_call(
        kernel,
        out_shape=jax.ShapeDtypeStruct((n_pad, d_model), lut.dtype),
        grid_spec=pltpu.PrefetchScalarGridSpec(
            num_scalar_prefetch=1,                      # ids -> SMEM
            grid=(n_pad // tb,),
            in_specs=[pl.BlockSpec(memory_space=pl.ANY)],   # table stays in HBM
            out_specs=pl.BlockSpec((tb, d_model), lambda i, ids: (i, 0)),
            scratch_shapes=[pltpu.SemaphoreType.DMA((n_inflight,))],
        ),
        compiler_params=pltpu.CompilerParams(
            dimension_semantics=("parallel",),
            vmem_limit_bytes=vmem_limit,
        ),
    )(ids, lut_scaled)


# --------------------------------------------------------------------------
# Forward
# --------------------------------------------------------------------------
def embeddings_forward(x, lut, *, tb=512, force_hbm=False):
    """x: (B, S) int token ids; lut: (vocab, d_model) embedding table.
    Returns (B, S, d_model) = lut[x] * sqrt(d_model)."""
    B, S = x.shape
    vocab, d_model = lut.shape
    N = B * S
    scale = math.sqrt(d_model)
    itemsize = jnp.dtype(lut.dtype).itemsize

    capacity = _vmem_capacity_bytes()
    usable = max(capacity - _VMEM_HEADROOM, 16 << 20)

    # Token-block size: multiple of 8 (sublane rule), large to amortize the
    # ~0.35 us per-grid-step pipeline overhead.
    tb = _round_up(max(8, min(int(tb), _round_up(N, 8))), 8)

    table_bytes = vocab * d_model * itemsize
    use_hbm = force_hbm or (table_bytes + 2 * 8 * d_model * itemsize > usable)
    if not use_hbm:
        # Shrink the output tile if resident (single-buffered) table + output
        # double-buffer would exceed this generation's VMEM budget.
        while tb > 8 and table_bytes + 2 * tb * d_model * itemsize > usable:
            tb = _round_up(tb // 2, 8)
    n_pad = _round_up(N, tb)

    # Scalar-prefetched ids land in SMEM; a 1-D int32 array pads to
    # next_pow2(4*n_pad) bytes — guard against overflow at huge B*S.
    if _next_pow2(4 * n_pad) > _SMEM_IDS_LIMIT:
        # TODO(synk): tile the ids per grid step instead of prefetching all of
        # them once B*S reaches hundreds of K tokens.
        raise NotImplementedError("token count too large for scalar-prefetched ids")

    ids = x.reshape(N).astype(jnp.int32)
    # nn.Embedding raises on out-of-range ids; a kernel cannot raise, so clamp
    # (documented semantic difference: invalid ids map to row 0 / vocab-1).
    ids = jnp.clip(ids, 0, vocab - 1)
    if n_pad != N:
        ids = jnp.pad(ids, (0, n_pad - N))              # pad with valid id 0; trimmed below

    if use_hbm:
        out_flat = _run_hbm_path(ids, lut, n_pad=n_pad, tb=tb, scale=scale,
                                 capacity=capacity)
    else:
        try:
            out_flat = _run_vmem_path(ids, lut, n_pad=n_pad, tb=tb, scale=scale,
                                      capacity=capacity, fast=True)
        except Exception:
            # Fallback if Buffered(1) / slab-concat is rejected by this
            # jax/Mosaic build: default double-buffered table, per-row stores.
            out_flat = _run_vmem_path(ids, lut, n_pad=n_pad, tb=tb, scale=scale,
                                      capacity=capacity, fast=False)

    return out_flat[:N].reshape(B, S, d_model)


if __name__ == "__main__":
    # Small shapes consistent with the module's forward.
    B, S = 2, 8
    vocab, d_model = 64, 32

    key = jax.random.PRNGKey(0)
    k_lut, k_ids = jax.random.split(key)

    # nn.Embedding default init: N(0, 1)
    lut = jax.random.normal(k_lut, (vocab, d_model), dtype=jnp.float32)
    x = jax.random.randint(k_ids, (B, S), 0, vocab, dtype=jnp.int32)

    ref = jnp.take(lut, x, axis=0) * math.sqrt(d_model)

    # VMEM-resident path (table fits).
    out = jax.block_until_ready(embeddings_forward(x, lut))
    assert out.shape == (B, S, d_model)
    assert jnp.allclose(out, ref, atol=1e-5, rtol=1e-5), "VMEM path mismatch vs reference"

    # HBM DMA-gather path (used when the table cannot be VMEM-resident).
    out_hbm = jax.block_until_ready(embeddings_forward(x, lut, force_hbm=True))
    assert jnp.allclose(out_hbm, ref, atol=1e-5, rtol=1e-5), "HBM path mismatch vs reference"

    print("KERNEL_OK")
</pallas_src>

<mosaic_0001>
module attributes {stable_mosaic.version = 11 : i64} {
  func.func @_embed_vmem_kernel(%arg0: i32, %arg1: memref<16xi32, #tpu.memory_space<smem>>, %arg2: memref<64x32xf32, #tpu.memory_space<vmem>>, %arg3: memref<16x32xf32, #tpu.memory_space<vmem>>) attributes {dimension_semantics = [#tpu.dimension_semantics<parallel>], iteration_bounds = array<i64: 1>, scalar_prefetch = 1 : i64, scratch_operands = 0 : i64, tpu.core_type = #tpu.core_type<tc>, window_params = [{pipeline_mode = #tpu.pipeline_mode<synchronous>, transform_indices = @transform_0, window_bounds = array<i64: 64, 32>}, {transform_indices = @transform_1, window_bounds = array<i64: 16, 32>}]} {
    %c16_i32 = arith.constant 16 : i32
    %0 = arith.muli %arg0, %c16_i32 : i32
    %c0_i32 = arith.constant 0 : i32
    %c2_i32 = arith.constant 2 : i32
    %1 = arith.addi %c0_i32, %c2_i32 : i32
    %c1_i32 = arith.constant 1 : i32
    scf.for %arg4 = %c0_i32 to %1 step %c1_i32  : i32 {
      %c1_i32_1 = arith.constant 1 : i32
      %2 = arith.muli %arg4, %c1_i32_1 : i32
      %c0_i32_2 = arith.constant 0 : i32
      %3 = arith.addi %c0_i32_2, %2 : i32
      %c8_i32 = arith.constant 8 : i32
      %4 = arith.muli %3, %c8_i32 : i32
      %5 = tpu.assume_multiple %4, 8 : i32
      %6 = arith.addi %0, %5 : i32
      %c0_i32_3 = arith.constant 0 : i32
      %7 = arith.addi %6, %c0_i32_3 : i32
      %8 = arith.index_cast %7 : i32 to index
      %9 = memref.load %arg1[%8] : memref<16xi32, #tpu.memory_space<smem>>
      %10 = arith.index_cast %9 : i32 to index
      %c0 = arith.constant 0 : index
      %11 = vector.load %arg2[%10, %c0] : memref<64x32xf32, #tpu.memory_space<vmem>>, vector<1x32xf32>
      %12 = arith.addi %0, %5 : i32
      %c1_i32_4 = arith.constant 1 : i32
      %13 = arith.addi %12, %c1_i32_4 : i32
      %14 = arith.index_cast %13 : i32 to index
      %15 = memref.load %arg1[%14] : memref<16xi32, #tpu.memory_space<smem>>
      %16 = arith.index_cast %15 : i32 to index
      %c0_5 = arith.constant 0 : index
      %17 = vector.load %arg2[%16, %c0_5] : memref<64x32xf32, #tpu.memory_space<vmem>>, vector<1x32xf32>
      %18 = arith.addi %0, %5 : i32
      %c2_i32_6 = arith.constant 2 : i32
      %19 = arith.addi %18, %c2_i32_6 : i32
      %20 = arith.index_cast %19 : i32 to index
      %21 = memref.load %arg1[%20] : memref<16xi32, #tpu.memory_space<smem>>
      %22 = arith.index_cast %21 : i32 to index
      %c0_7 = arith.constant 0 : index
      %23 = vector.load %arg2[%22, %c0_7] : memref<64x32xf32, #tpu.memory_space<vmem>>, vector<1x32xf32>
      %24 = arith.addi %0, %5 : i32
      %c3_i32 = arith.constant 3 : i32
      %25 = arith.addi %24, %c3_i32 : i32
      %26 = arith.index_cast %25 : i32 to index
      %27 = memref.load %arg1[%26] : memref<16xi32, #tpu.memory_space<smem>>
      %28 = arith.index_cast %27 : i32 to index
      %c0_8 = arith.constant 0 : index
      %29 = vector.load %arg2[%28, %c0_8] : memref<64x32xf32, #tpu.memory_space<vmem>>, vector<1x32xf32>
      %30 = arith.addi %0, %5 : i32
      %c4_i32 = arith.constant 4 : i32
      %31 = arith.addi %30, %c4_i32 : i32
      %32 = arith.index_cast %31 : i32 to index
      %33 = memref.load %arg1[%32] : memref<16xi32, #tpu.memory_space<smem>>
      %34 = arith.index_cast %33 : i32 to index
      %c0_9 = arith.constant 0 : index
      %35 = vector.load %arg2[%34, %c0_9] : memref<64x32xf32, #tpu.memory_space<vmem>>, vector<1x32xf32>
      %36 = arith.addi %0, %5 : i32
      %c5_i32 = arith.constant 5 : i32
      %37 = arith.addi %36, %c5_i32 : i32
      %38 = arith.index_cast %37 : i32 to index
      %39 = memref.load %arg1[%38] : memref<16xi32, #tpu.memory_space<smem>>
      %40 = arith.index_cast %39 : i32 to index
      %c0_10 = arith.constant 0 : index
      %41 = vector.load %arg2[%40, %c0_10] : memref<64x32xf32, #tpu.memory_space<vmem>>, vector<1x32xf32>
      %42 = arith.addi %0, %5 : i32
      %c6_i32 = arith.constant 6 : i32
      %43 = arith.addi %42, %c6_i32 : i32
      %44 = arith.index_cast %43 : i32 to index
      %45 = memref.load %arg1[%44] : memref<16xi32, #tpu.memory_space<smem>>
      %46 = arith.index_cast %45 : i32 to index
      %c0_11 = arith.constant 0 : index
      %47 = vector.load %arg2[%46, %c0_11] : memref<64x32xf32, #tpu.memory_space<vmem>>, vector<1x32xf32>
      %48 = arith.addi %0, %5 : i32
      %c7_i32 = arith.constant 7 : i32
      %49 = arith.addi %48, %c7_i32 : i32
      %50 = arith.index_cast %49 : i32 to index
      %51 = memref.load %arg1[%50] : memref<16xi32, #tpu.memory_space<smem>>
      %52 = arith.index_cast %51 : i32 to index
      %c0_12 = arith.constant 0 : index
      %53 = vector.load %arg2[%52, %c0_12] : memref<64x32xf32, #tpu.memory_space<vmem>>, vector<1x32xf32>
      %54 = tpu.concatenate %11, %17, %23, %29, %35, %41, %47, %53 in 0 : vector<1x32xf32>, vector<1x32xf32>, vector<1x32xf32>, vector<1x32xf32>, vector<1x32xf32>, vector<1x32xf32>, vector<1x32xf32>, vector<1x32xf32> -> vector<8x32xf32>
      %cst = arith.constant 5.65685415 : f32
      %55 = vector.broadcast %cst : f32 to vector<8x32xf32>
      %56 = arith.mulf %54, %55 : vector<8x32xf32>
      %57 = arith.index_cast %5 : i32 to index
      %c0_13 = arith.constant 0 : index
      %58 = vector.load %arg3[%57, %c0_13] : memref<16x32xf32, #tpu.memory_space<vmem>>, vector<8x32xf32>
      tpu.vector_store %arg3[%57, %c0_13], %56 {strides = array<i32>} : memref<16x32xf32, #tpu.memory_space<vmem>>, vector<8x32xf32>,
    }
    %c2_i32_0 = arith.constant 2 : i32
    return
  }
  func.func @transform_0(%arg0: i32, %arg1: memref<16xi32, #tpu.memory_space<smem>>) -> (i32, i32) {
    %c0_i32 = arith.constant 0 : i32
    %c0_i32_0 = arith.constant 0 : i32
    %c0_i32_1 = arith.constant 0 : i32
    return %c0_i32, %c0_i32_0 : i32, i32
  }
  func.func @transform_1(%arg0: i32, %arg1: memref<16xi32, #tpu.memory_space<smem>>) -> (i32, i32) {
    %c0_i32 = arith.constant 0 : i32
    %c0_i32_0 = arith.constant 0 : i32
    return %arg0, %c0_i32 : i32, i32
  }
}

module attributes {stable_mosaic.version = 11 : i64} {
  func.func @_embed_vmem_kernel(%arg0: i32, %arg1: memref<16xi32, #tpu.memory_space<smem>>, %arg2: memref<64x32xf32, #tpu.memory_space<vmem>>, %arg3: memref<16x32xf32, #tpu.memory_space<vmem>>) attributes {dimension_semantics = [#tpu.dimension_semantics<parallel>], iteration_bounds = array<i64: 1>, scalar_prefetch = 1 : i64, scratch_operands = 0 : i64, tpu.core_type = #tpu.core_type<tc>, window_params = [{pipeline_mode = #tpu.pipeline_mode<synchronous>, transform_indices = @transform_0, window_bounds = array<i64: 64, 32>}, {transform_indices = @transform_1, window_bounds = array<i64: 16, 32>}]} {
    %c16_i32 = arith.constant 16 : i32
    %0 = arith.muli %arg0, %c16_i32 : i32
    %c0_i32 = arith.constant 0 : i32
    %c2_i32 = arith.constant 2 : i32
    %1 = arith.addi %c0_i32, %c2_i32 : i32
    %c1_i32 = arith.constant 1 : i32
    scf.for %arg4 = %c0_i32 to %1 step %c1_i32  : i32 {
      %c1_i32_1 = arith.constant 1 : i32
      %2 = arith.muli %arg4, %c1_i32_1 : i32
      %c0_i32_2 = arith.constant 0 : i32
      %3 = arith.addi %c0_i32_2, %2 : i32
      %c8_i32 = arith.constant 8 : i32
      %4 = arith.muli %3, %c8_i32 : i32
      %5 = tpu.assume_multiple %4, 8 : i32
      %6 = arith.addi %0, %5 : i32
      %c0_i32_3 = arith.constant 0 : i32
      %7 = arith.addi %6, %c0_i32_3 : i32
      %8 = arith.index_cast %7 : i32 to index
      %9 = memref.load %arg1[%8] : memref<16xi32, #tpu.memory_space<smem>>
      %10 = arith.index_cast %9 : i32 to index
      %c0 = arith.constant 0 : index
      %11 = vector.load %arg2[%10, %c0] : memref<64x32xf32, #tpu.memory_space<vmem>>, vector<1x32xf32>
      %12 = arith.addi %0, %5 : i32
      %c1_i32_4 = arith.constant 1 : i32
      %13 = arith.addi %12, %c1_i32_4 : i32
      %14 = arith.index_cast %13 : i32 to index
      %15 = memref.load %arg1[%14] : memref<16xi32, #tpu.memory_space<smem>>
      %16 = arith.index_cast %15 : i32 to index
      %c0_5 = arith.constant 0 : index
      %17 = vector.load %arg2[%16, %c0_5] : memref<64x32xf32, #tpu.memory_space<vmem>>, vector<1x32xf32>
      %18 = arith.addi %0, %5 : i32
      %c2_i32_6 = arith.constant 2 : i32
      %19 = arith.addi %18, %c2_i32_6 : i32
      %20 = arith.index_cast %19 : i32 to index
      %21 = memref.load %arg1[%20] : memref<16xi32, #tpu.memory_space<smem>>
      %22 = arith.index_cast %21 : i32 to index
      %c0_7 = arith.constant 0 : index
      %23 = vector.load %arg2[%22, %c0_7] : memref<64x32xf32, #tpu.memory_space<vmem>>, vector<1x32xf32>
      %24 = arith.addi %0, %5 : i32
      %c3_i32 = arith.constant 3 : i32
      %25 = arith.addi %24, %c3_i32 : i32
      %26 = arith.index_cast %25 : i32 to index
      %27 = memref.load %arg1[%26] : memref<16xi32, #tpu.memory_space<smem>>
      %28 = arith.index_cast %27 : i32 to index
      %c0_8 = arith.constant 0 : index
      %29 = vector.load %arg2[%28, %c0_8] : memref<64x32xf32, #tpu.memory_space<vmem>>, vector<1x32xf32>
      %30 = arith.addi %0, %5 : i32
      %c4_i32 = arith.constant 4 : i32
      %31 = arith.addi %30, %c4_i32 : i32
      %32 = arith.index_cast %31 : i32 to index
      %33 = memref.load %arg1[%32] : memref<16xi32, #tpu.memory_space<smem>>
      %34 = arith.index_cast %33 : i32 to index
      %c0_9 = arith.constant 0 : index
      %35 = vector.load %arg2[%34, %c0_9] : memref<64x32xf32, #tpu.memory_space<vmem>>, vector<1x32xf32>
      %36 = arith.addi %0, %5 : i32
      %c5_i32 = arith.constant 5 : i32
      %37 = arith.addi %36, %c5_i32 : i32
      %38 = arith.index_cast %37 : i32 to index
      %39 = memref.load %arg1[%38] : memref<16xi32, #tpu.memory_space<smem>>
      %40 = arith.index_cast %39 : i32 to index
      %c0_10 = arith.constant 0 : index
      %41 = vector.load %arg2[%40, %c0_10] : memref<64x32xf32, #tpu.memory_space<vmem>>, vector<1x32xf32>
      %42 = arith.addi %0, %5 : i32
      %c6_i32 = arith.constant 6 : i32
      %43 = arith.addi %42, %c6_i32 : i32
      %44 = arith.index_cast %43 : i32 to index
      %45 = memref.load %arg1[%44] : memref<16xi32, #tpu.memory_space<smem>>
      %46 = arith.index_cast %45 : i32 to index
      %c0_11 = arith.constant 0 : index
      %47 = vector.load %arg2[%46, %c0_11] : memref<64x32xf32, #tpu.memory_space<vmem>>, vector<1x32xf32>
      %48 = arith.addi %0, %5 : i32
      %c7_i32 = arith.constant 7 : i32
      %49 = arith.addi %48, %c7_i32 : i32
      %50 = arith.index_cast %49 : i32 to index
      %51 = memref.load %arg1[%50] : memref<16xi32, #tpu.memory_space<smem>>
      %52 = arith.index_cast %51 : i32 to index
      %c0_12 = arith.constant 0 : index
      %53 = vector.load %arg2[%52, %c0_12] : memref<64x32xf32, #tpu.memory_space<vmem>>, vector<1x32xf32>
      %cst = arith.constant 5.65685415 : f32
      %54 = vector.broadcast %cst : f32 to vector<1x32xf32>
      %55 = arith.mulf %11, %54 : vector<1x32xf32>
      %c0_i32_13 = arith.constant 0 : i32
      %56 = arith.addi %5, %c0_i32_13 : i32
      %57 = arith.index_cast %56 : i32 to index
      %c0_14 = arith.constant 0 : index
      %58 = vector.load %arg3[%57, %c0_14] : memref<16x32xf32, #tpu.memory_space<vmem>>, vector<1x32xf32>
      tpu.vector_store %arg3[%57, %c0_14], %55 {strides = array<i32>} : memref<16x32xf32, #tpu.memory_space<vmem>>, vector<1x32xf32>,
      %cst_15 = arith.constant 5.65685415 : f32
      %59 = vector.broadcast %cst_15 : f32 to vector<1x32xf32>
      %60 = arith.mulf %17, %59 : vector<1x32xf32>
      %c1_i32_16 = arith.constant 1 : i32
      %61 = arith.addi %5, %c1_i32_16 : i32
      %62 = arith.index_cast %61 : i32 to index
      %c0_17 = arith.constant 0 : index
      %63 = vector.load %arg3[%62, %c0_17] : memref<16x32xf32, #tpu.memory_space<vmem>>, vector<1x32xf32>
      tpu.vector_store %arg3[%62, %c0_17], %60 {strides = array<i32>} : memref<16x32xf32, #tpu.memory_space<vmem>>, vector<1x32xf32>,
      %cst_18 = arith.constant 5.65685415 : f32
      %64 = vector.broadcast %cst_18 : f32 to vector<1x32xf32>
      %65 = arith.mulf %23, %64 : vector<1x32xf32>
      %c2_i32_19 = arith.constant 2 : i32
      %66 = arith.addi %5, %c2_i32_19 : i32
      %67 = arith.index_cast %66 : i32 to index
      %c0_20 = arith.constant 0 : index
      %68 = vector.load %arg3[%67, %c0_20] : memref<16x32xf32, #tpu.memory_space<vmem>>, vector<1x32xf32>
      tpu.vector_store %arg3[%67, %c0_20], %65 {strides = array<i32>} : memref<16x32xf32, #tpu.memory_space<vmem>>, vector<1x32xf32>,
      %cst_21 = arith.constant 5.65685415 : f32
      %69 = vector.broadcast %cst_21 : f32 to vector<1x32xf32>
      %70 = arith.mulf %29, %69 : vector<1x32xf32>
      %c3_i32_22 = arith.constant 3 : i32
      %71 = arith.addi %5, %c3_i32_22 : i32
      %72 = arith.index_cast %71 : i32 to index
      %c0_23 = arith.constant 0 : index
      %73 = vector.load %arg3[%72, %c0_23] : memref<16x32xf32, #tpu.memory_space<vmem>>, vector<1x32xf32>
      tpu.vector_store %arg3[%72, %c0_23], %70 {strides = array<i32>} : memref<16x32xf32, #tpu.memory_space<vmem>>, vector<1x32xf32>,
      %cst_24 = arith.constant 5.65685415 : f32
      %74 = vector.broadcast %cst_24 : f32 to vector<1x32xf32>
      %75 = arith.mulf %35, %74 : vector<1x32xf32>
      %c4_i32_25 = arith.constant 4 : i32
      %76 = arith.addi %5, %c4_i32_25 : i32
      %77 = arith.index_cast %76 : i32 to index
      %c0_26 = arith.constant 0 : index
      %78 = vector.load %arg3[%77, %c0_26] : memref<16x32xf32, #tpu.memory_space<vmem>>, vector<1x32xf32>
      tpu.vector_store %arg3[%77, %c0_26], %75 {strides = array<i32>} : memref<16x32xf32, #tpu.memory_space<vmem>>, vector<1x32xf32>,
      %cst_27 = arith.constant 5.65685415 : f32
      %79 = vector.broadcast %cst_27 : f32 to vector<1x32xf32>
      %80 = arith.mulf %41, %79 : vector<1x32xf32>
      %c5_i32_28 = arith.constant 5 : i32
      %81 = arith.addi %5, %c5_i32_28 : i32
      %82 = arith.index_cast %81 : i32 to index
      %c0_29 = arith.constant 0 : index
      %83 = vector.load %arg3[%82, %c0_29] : memref<16x32xf32, #tpu.memory_space<vmem>>, vector<1x32xf32>
      tpu.vector_store %arg3[%82, %c0_29], %80 {strides = array<i32>} : memref<16x32xf32, #tpu.memory_space<vmem>>, vector<1x32xf32>,
      %cst_30 = arith.constant 5.65685415 : f32
      %84 = vector.broadcast %cst_30 : f32 to vector<1x32xf32>
      %85 = arith.mulf %47, %84 : vector<1x32xf32>
      %c6_i32_31 = arith.constant 6 : i32
      %86 = arith.addi %5, %c6_i32_31 : i32
      %87 = arith.index_cast %86 : i32 to index
      %c0_32 = arith.constant 0 : index
      %88 = vector.load %arg3[%87, %c0_32] : memref<16x32xf32, #tpu.memory_space<vmem>>, vector<1x32xf32>
      tpu.vector_store %arg3[%87, %c0_32], %85 {strides = array<i32>} : memref<16x32xf32, #tpu.memory_space<vmem>>, vector<1x32xf32>,
      %cst_33 = arith.constant 5.65685415 : f32
      %89 = vector.broadcast %cst_33 : f32 to vector<1x32xf32>
      %90 = arith.mulf %53, %89 : vector<1x32xf32>
      %c7_i32_34 = arith.constant 7 : i32
      %91 = arith.addi %5, %c7_i32_34 : i32
      %92 = arith.index_cast %91 : i32 to index
      %c0_35 = arith.constant 0 : index
      %93 = vector.load %arg3[%92, %c0_35] : memref<16x32xf32, #tpu.memory_space<vmem>>, vector<1x32xf32>
      tpu.vector_store %arg3[%92, %c0_35], %90 {strides = array<i32>} : memref<16x32xf32, #tpu.memory_space<vmem>>, vector<1x32xf32>,
    }
    %c2_i32_0 = arith.constant 2 : i32
    return
  }
  func.func @transform_0(%arg0: i32, %arg1: memref<16xi32, #tpu.memory_space<smem>>) -> (i32, i32) {
    %c0_i32 = arith.constant 0 : i32
    %c0_i32_0 = arith.constant 0 : i32
    %c0_i32_1 = arith.constant 0 : i32
    return %c0_i32, %c0_i32_0 : i32, i32
  }
  func.func @transform_1(%arg0: i32, %arg1: memref<16xi32, #tpu.memory_space<smem>>) -> (i32, i32) {
    %c0_i32 = arith.constant 0 : i32
    %c0_i32_0 = arith.constant 0 : i32
    return %arg0, %c0_i32 : i32, i32
  }
}

</mosaic_0001>

<llo_original>
// kernel: tpu_custom_call.1
$region0: #{tpu_custom_call.1}
  #allocation0 [shape = 'u32[]', space=smem, size = 0x4, offset = 0x4, fixed_abs, tag = 'smem constant byte address 0x4 - core index']
  #allocation1 [shape = 'u32[72,128]{1,0:T(1,128)}', space=vmem, size = 0x9000, scoped, tag = 'internal scratch']
  #allocation2 [shape = 's32[1]{0}', space=sflag, size = 0x4, scoped, tag = 'scoped memory for tpu_custom_call.1']
  #allocation3 [shape = 'u8[512]{0}', space=smem, size = 0x200, scoped, tag = 'prefetched SMEM operand 0']
  %s0 = inlined_call_operand.vmem [shape: s32[16], index: 0, kind: input, shape index: {}]
  %s1 = inlined_call_operand.vmem [shape: f32[64,32], index: 1, kind: input, shape index: {}]
  %s2 = inlined_call_operand.hbm [shape: f32[16,32], index: 2, kind: output, shape index: {}]
  %s3 = sld [smem:[#allocation0]]
  $region21: #{tpu_custom_call.1} parent=0
    _
  %s5 = ssub.s32 1, %s3
  %s6 = scalar_select 0, %s5, %s3
  %s8 = sshll.u32 %s0, 4
  %s9 = int_to_ptr.vmem [resolvable:$true] %s8
  %11 = dma.vmem_to_smem %s9, 16, [#allocation3], [#allocation2]
  %13 = dma.done [#allocation2], 16
  %14 = sfence
  $region1: #{tpu_custom_call.1} parent=0
    #allocation4 [shape = 'u8[8192]{0}', space=vmem, size = 0x2000, scoped, tag = 'output window, operand 0, single buffered']
    #allocation5 [shape = 's32[1]{0}', space=sflag, size = 0x4, scoped, tag = 'scoped memory for tpu_custom_call.1']
    %15 = vsyncpa [#allocation5], 0
    // Predicated region
    $region2: #{tpu_custom_call.1} parent=1 // pred_check
      _
    $region3: #{tpu_custom_call.1} parent=1 // pred_check_branch
      %17 = sbr.rel (0) target = $region5
    $region4: #{tpu_custom_call.1} parent=1 // pred_region
      _
    $region5: #{tpu_custom_call.1} parent=1 // pred_fallthru
      _
    %s18 = smul.u32 0, 16
    loop: start=0, step=1, limit=2
    $region6: #{tpu_custom_call.1} parent=1 // loop_pre_header
      _
    $region7: #{tpu_custom_call.1} parent=1 // loop_header
      %s20 = sphi 0, %s24
      %p21 = scmp.ge.s32.totalorder %s20, 2
    $region8: #{tpu_custom_call.1} parent=1 // loop_header_branch
      %23 = sbr.rel (%p21) target = $region12
    $region9: #{tpu_custom_call.1} parent=1 // loop_body
      %s25 = smul.u32 %s20, 8
      %s26 = sadd.s32 %s18, %s25
      %s27 = sld [smem:[#allocation3 + %s26]]
      %s28 = scalar_lea.vmem %s1, %s27
      %v29 = vld [vmem:[%s28] sm:$0x1]
      %s30 = sadd.s32 %s26, 1
      %s31 = sld [smem:[#allocation3 + %s30]]
      %s32 = scalar_lea.vmem %s1, %s31
      %v33 = vld [vmem:[%s32] sm:$0x1]
      %s34 = sadd.s32 %s26, 2
      %s35 = sld [smem:[#allocation3 + %s34]]
      %s36 = scalar_lea.vmem %s1, %s35
      %v37 = vld [vmem:[%s36] sm:$0x1]
      %s38 = sadd.s32 %s26, 3
      %s39 = sld [smem:[#allocation3 + %s38]]
      %s40 = scalar_lea.vmem %s1, %s39
      %v41 = vld [vmem:[%s40] sm:$0x1]
      %s42 = sadd.s32 %s26, 4
      %s43 = sld [smem:[#allocation3 + %s42]]
      %s44 = scalar_lea.vmem %s1, %s43
      %v45 = vld [vmem:[%s44] sm:$0x1]
      %s46 = sadd.s32 %s26, 5
      %s47 = sld [smem:[#allocation3 + %s46]]
      %s48 = scalar_lea.vmem %s1, %s47
      %v49 = vld [vmem:[%s48] sm:$0x1]
      %s50 = sadd.s32 %s26, 6
      %s51 = sld [smem:[#allocation3 + %s50]]
      %s52 = scalar_lea.vmem %s1, %s51
      %v53 = vld [vmem:[%s52] sm:$0x1]
      %s54 = sadd.s32 %s26, 7
      %s55 = sld [smem:[#allocation3 + %s54]]
      %s56 = scalar_lea.vmem %s1, %s55
      %v57 = vld [vmem:[%s56] sm:$0x1]
      %v59 = vrot.slane %v33, 7
      %v62 = vrot.slane %v37, 6
      %v65 = vrot.slane %v41, 5
      %v68 = vrot.slane %v45, 4
      %v71 = vrot.slane %v49, 3
      %v74 = vrot.slane %v53, 2
      %v77 = vrot.slane %v57, 1
      %vm79 = vcmask 1040384
      %v80 = vsel %vm79, %v29, %v59
      %vm81 = vcmask 1041408
      %v82 = vsel %vm81, %v80, %v62
      %vm83 = vcmask 1042432
      %v84 = vsel %vm83, %v82, %v65
      %vm85 = vcmask 1043456
      %v86 = vsel %vm85, %v84, %v68
      %vm87 = vcmask 1044480
      %v88 = vsel %vm87, %v86, %v71
      %vm89 = vcmask 1045504
      %v90 = vsel %vm89, %v88, %v74
      %vm91 = vcmask 1046528
      %v92 = vsel %vm91, %v90, %v77
      %v93 = vmul.f32 %v92, 5.656854
      %s94 = scalar_lea.vmem [#allocation4], %s25
      %vm95 = vcmask 261120
      %96 = vst.msk [vmem:[%s94] sm:$0xff] %vm95, %v93
    $region10: #{tpu_custom_call.1} parent=1 // loop_footer
      %s24 = sadd.s32 1, %s20
    $region11: #{tpu_custom_call.1} parent=1 // loop_footer_branch
      %19 = sbr.rel target = $region7
    $region12: #{tpu_custom_call.1} parent=1 // loop_exit
      _
    // Predicated region
    $region13: #{tpu_custom_call.1} parent=1 // pred_check
      _
    $region14: #{tpu_custom_call.1} parent=1 // pred_check_branch
      %98 = sbr.rel (0) target = $region16
    $region15: #{tpu_custom_call.1} parent=1 // pred_region
      %100 = vsyncadd [#allocation5], 0
      %s101 = sshll.u32 [#allocation4], 4
      %s102 = int_to_ptr.vmem [resolvable:$true] %s101
      %s103 = sshll.u32 %s2, 4
      %s104 = int_to_ptr.hbm [resolvable:$true] %s103
      %109 = dma.vmem_to_hbm [thread:$0]  %s102, 256, %s104, [#allocation5], 128, 128, 8
    $region16: #{tpu_custom_call.1} parent=1 // pred_fallthru
      _
    // Predicated region
    $region17: #{tpu_custom_call.1} parent=1 // pred_check
      _
    $region18: #{tpu_custom_call.1} parent=1 // pred_check_branch
      %111 = sbr.rel (0) target = $region20
    $region19: #{tpu_custom_call.1} parent=1 // pred_region
      %113 = dma.done [#allocation5], 256
    $region20: #{tpu_custom_call.1} parent=1 // pred_fallthru
      _
    %114 = vsyncpa [#allocation5], 1

// kernel: tpu_custom_call.1
$region0: #{tpu_custom_call.1}
  #allocation0 [shape = 'u32[]', space=smem, size = 0x4, offset = 0x4, fixed_abs, tag = 'smem constant byte address 0x4 - core index']
  #allocation1 [shape = 'u32[72,128]{1,0:T(1,128)}', space=vmem, size = 0x9000, scoped, tag = 'internal scratch']
  #allocation2 [shape = 's32[1]{0}', space=sflag, size = 0x4, scoped, tag = 'scoped memory for tpu_custom_call.1']
  #allocation3 [shape = 'u8[512]{0}', space=smem, size = 0x200, scoped, tag = 'prefetched SMEM operand 0']
  %s0 = inlined_call_operand.vmem [shape: s32[16], index: 0, kind: input, shape index: {}]
  %s1 = inlined_call_operand.vmem [shape: f32[64,32], index: 1, kind: input, shape index: {}]
  %s2 = inlined_call_operand.hbm [shape: f32[16,32], index: 2, kind: output, shape index: {}]
  %s3 = sld [smem:[#allocation0]]
  $region21: #{tpu_custom_call.1} parent=0
    _
  %s5 = ssub.s32 1, %s3
  %s6 = scalar_select 0, %s5, %s3
  %s8 = sshll.u32 %s0, 4
  %s9 = int_to_ptr.vmem [resolvable:$true] %s8
  %11 = dma.vmem_to_smem %s9, 16, [#allocation3], [#allocation2]
  %13 = dma.done [#allocation2], 16
  %14 = sfence
  $region1: #{tpu_custom_call.1} parent=0
    #allocation4 [shape = 'u8[8192]{0}', space=vmem, size = 0x2000, scoped, tag = 'output window, operand 0, single buffered']
    #allocation5 [shape = 's32[1]{0}', space=sflag, size = 0x4, scoped, tag = 'scoped memory for tpu_custom_call.1']
    %15 = vsyncpa [#allocation5], 0
    // Predicated region
    $region2: #{tpu_custom_call.1} parent=1 // pred_check
      _
    $region3: #{tpu_custom_call.1} parent=1 // pred_check_branch
      %17 = sbr.rel (0) target = $region5
    $region4: #{tpu_custom_call.1} parent=1 // pred_region
      _
    $region5: #{tpu_custom_call.1} parent=1 // pred_fallthru
      _
    %s18 = smul.u32 0, 16
    loop: start=0, step=1, limit=2
    $region6: #{tpu_custom_call.1} parent=1 // loop_pre_header
      _
    $region7: #{tpu_custom_call.1} parent=1 // loop_header
      %s20 = sphi 0, %s24
      %p21 = scmp.ge.s32.totalorder %s20, 2
    $region8: #{tpu_custom_call.1} parent=1 // loop_header_branch
      %23 = sbr.rel (%p21) target = $region12
    $region9: #{tpu_custom_call.1} parent=1 // loop_body
      %s25 = smul.u32 %s20, 8
      %s26 = sadd.s32 %s18, %s25
      %s27 = sld [smem:[#allocation3 + %s26]]
      %s28 = scalar_lea.vmem %s1, %s27
      %v29 = vld [vmem:[%s28] sm:$0x1]
      %s30 = sadd.s32 %s26, 1
      %s31 = sld [smem:[#allocation3 + %s30]]
      %s32 = scalar_lea.vmem %s1, %s31
      %v33 = vld [vmem:[%s32] sm:$0x1]
      %s34 = sadd.s32 %s26, 2
      %s35 = sld [smem:[#allocation3 + %s34]]
      %s36 = scalar_lea.vmem %s1, %s35
      %v37 = vld [vmem:[%s36] sm:$0x1]
      %s38 = sadd.s32 %s26, 3
      %s39 = sld [smem:[#allocation3 + %s38]]
      %s40 = scalar_lea.vmem %s1, %s39
      %v41 = vld [vmem:[%s40] sm:$0x1]
      %s42 = sadd.s32 %s26, 4
      %s43 = sld [smem:[#allocation3 + %s42]]
      %s44 = scalar_lea.vmem %s1, %s43
      %v45 = vld [vmem:[%s44] sm:$0x1]
      %s46 = sadd.s32 %s26, 5
      %s47 = sld [smem:[#allocation3 + %s46]]
      %s48 = scalar_lea.vmem %s1, %s47
      %v49 = vld [vmem:[%s48] sm:$0x1]
      %s50 = sadd.s32 %s26, 6
      %s51 = sld [smem:[#allocation3 + %s50]]
      %s52 = scalar_lea.vmem %s1, %s51
      %v53 = vld [vmem:[%s52] sm:$0x1]
      %s54 = sadd.s32 %s26, 7
      %s55 = sld [smem:[#allocation3 + %s54]]
      %s56 = scalar_lea.vmem %s1, %s55
      %v57 = vld [vmem:[%s56] sm:$0x1]
      %v58 = vmul.f32 %v29, 5.656854
      %s59 = scalar_lea.vmem [#allocation4], %s25
      %vm60 = vcmask 253952
      %61 = vst.msk [vmem:[%s59] sm:$0x1] %vm60, %v58
      %v62 = vmul.f32 %v33, 5.656854
      %s63 = sadd.s32 %s25, 1
      %s64 = scalar_lea.vmem [#allocation4], %s63
      %65 = vst.msk [vmem:[%s64] sm:$0x1] %vm60, %v62
      %v66 = vmul.f32 %v37, 5.656854
      %s67 = sadd.s32 %s25, 2
      %s68 = scalar_lea.vmem [#allocation4], %s67
      %69 = vst.msk [vmem:[%s68] sm:$0x1] %vm60, %v66
      %v70 = vmul.f32 %v41, 5.656854
      %s71 = sadd.s32 %s25, 3
      %s72 = scalar_lea.vmem [#allocation4], %s71
      %73 = vst.msk [vmem:[%s72] sm:$0x1] %vm60, %v70
      %v74 = vmul.f32 %v45, 5.656854
      %s75 = sadd.s32 %s25, 4
      %s76 = scalar_lea.vmem [#allocation4], %s75
      %77 = vst.msk [vmem:[%s76] sm:$0x1] %vm60, %v74
      %v78 = vmul.f32 %v49, 5.656854
      %s79 = sadd.s32 %s25, 5
      %s80 = scalar_lea.vmem [#allocation4], %s79
      %81 = vst.msk [vmem:[%s80] sm:$0x1] %vm60, %v78
      %v82 = vmul.f32 %v53, 5.656854
      %s83 = sadd.s32 %s25, 6
      %s84 = scalar_lea.vmem [#allocation4], %s83
      %85 = vst.msk [vmem:[%s84] sm:$0x1] %vm60, %v82
      %v86 = vmul.f32 %v57, 5.656854
      %s87 = sadd.s32 %s25, 7
      %s88 = scalar_lea.vmem [#allocation4], %s87
      %89 = vst.msk [vmem:[%s88] sm:$0x1] %vm60, %v86
    $region10: #{tpu_custom_call.1} parent=1 // loop_footer
      %s24 = sadd.s32 1, %s20
    $region11: #{tpu_custom_call.1} parent=1 // loop_footer_branch
      %19 = sbr.rel target = $region7
    $region12: #{tpu_custom_call.1} parent=1 // loop_exit
      _
    // Predicated region
    $region13: #{tpu_custom_call.1} parent=1 // pred_check
      _
    $region14: #{tpu_custom_call.1} parent=1 // pred_check_branch
      %91 = sbr.rel (0) target = $region16
    $region15: #{tpu_custom_call.1} parent=1 // pred_region
      %93 = vsyncadd [#allocation5], 0
      %s94 = sshll.u32 [#allocation4], 4
      %s95 = int_to_ptr.vmem [resolvable:$true] %s94
      %s96 = sshll.u32 %s2, 4
      %s97 = int_to_ptr.hbm [resolvable:$true] %s96
      %102 = dma.vmem_to_hbm [thread:$0]  %s95, 256, %s97, [#allocation5], 128, 128, 8
    $region16: #{tpu_custom_call.1} parent=1 // pred_fallthru
      _
    // Predicated region
    $region17: #{tpu_custom_call.1} parent=1 // pred_check
      _
    $region18: #{tpu_custom_call.1} parent=1 // pred_check_branch
      %104 = sbr.rel (0) target = $region20
    $region19: #{tpu_custom_call.1} parent=1 // pred_region
      %106 = dma.done [#allocation5], 256
    $region20: #{tpu_custom_call.1} parent=1 // pred_fallthru
      _
    %107 = vsyncpa [#allocation5], 1

</llo_original>
